<compile_context>
chip_gen: v5e
topology: v5e:2x2
jax: 0.10.0
libtpu: 0.0.40
codegen_flags: <defaults>
</compile_context>

<pallas_src>
import math
from functools import partial

import jax
import jax.numpy as jnp
from jax.experimental import pallas as pl
from jax.experimental.pallas import tpu as pltpu


# ---------------------------------------------------------------------------
# Quaternion weight construction (glue, plain JAX)
# ---------------------------------------------------------------------------
def construct_quaternion_weight(r, i, j, k):
    """r,i,j,k: (C_out//4, C_in_g//4, K) -> (C_out, C_in_g, K)."""
    row0 = jnp.concatenate([r, -i, -j, -k], axis=1)
    row1 = jnp.concatenate([i,  r, -k,  j], axis=1)
    row2 = jnp.concatenate([j,  k,  r, -i], axis=1)
    row3 = jnp.concatenate([k, -j,  i,  r], axis=1)
    return jnp.concatenate([row0, row1, row2, row3], axis=0)


def _round_up(a, m):
    return ((a + m - 1) // m) * m


# ---------------------------------------------------------------------------
# Pallas kernel: one tile = one folded-K matmul on the MXU
# ---------------------------------------------------------------------------
def _qconv1d_kernel(x_ref, xh_ref, w_ref, b_ref, o_ref, *,
                    K, dilation, halo, tile_l, compute_dtype):
    # x_ref : (1, C_in_g, tile_l)     main input tile (L on lanes)
    # xh_ref: (1, C_in_g, HALO_BLK)   start of the next tile (halo)
    # w_ref : (C_out_g, K*C_in_g)     folded-K weights
    # b_ref : (C_out_g, 1)            bias (f32)
    # o_ref : (1, C_out_g, tile_l)    lane-dense output tile
    x_main = x_ref[0]
    if halo > 0:
        xw = jnp.concatenate([x_main, xh_ref[0][:, :halo]], axis=-1)
    else:
        xw = x_main                                  # (C_in_g, tile_l + halo)

    w = w_ref[...]
    if compute_dtype is not None:                    # e.g. bf16 on v6e / v7x
        w = w.astype(compute_dtype)
        xw = xw.astype(compute_dtype)                # cast once, before copies

    # Stack the K shifted windows along the contraction (sublane) axis so the
    # whole conv is ONE MXU contraction instead of K shallow ones.
    taps = [xw[:, k * dilation:k * dilation + tile_l] for k in range(K)]
    x2 = taps[0] if K == 1 else jnp.concatenate(taps, axis=0)  # (K*C_in_g, tile_l)

    acc = jnp.dot(w, x2, preferred_element_type=jnp.float32)   # (C_out_g, tile_l)
    acc = acc + b_ref[...].astype(jnp.float32)
    o_ref[0] = acc.astype(o_ref.dtype)


# ---------------------------------------------------------------------------
# Wrapper: padding / tiling / groups plumbing (NCL layout, no transposes)
# ---------------------------------------------------------------------------
def qconv1d(x, r_w, i_w, j_w, k_w, bias=None, *, stride=1, padding=0,
            dilation=1, groups=1, padding_mode="zeros", tile_l=None,
            compute_dtype=None, vmem_limit_bytes=32 * 1024 * 1024):
    """x: (B, C_in, L) float (NCL, as in PyTorch). Returns (B, C_out, L_out)."""
    weight = construct_quaternion_weight(r_w, i_w, j_w, k_w)  # (C_out, C_in_g, K)
    B, C_in, L = x.shape
    C_out, C_in_g, K = weight.shape
    assert C_in % groups == 0 and C_out % groups == 0
    assert C_in // groups == C_in_g
    C_out_g = C_out // groups
    if groups > 1:
        # Per-group channel blocks must satisfy the (8, 128) block rule.
        # TODO(synk): zero-pad per-group channels to a multiple of 8 to lift this.
        assert C_in_g % 8 == 0 and C_out_g % 8 == 0, (C_in_g, C_out_g)

    # --- padding resolution (matches _QConvNd semantics) --------------------
    if isinstance(padding, str):
        if padding == "valid":
            pad_l = pad_r = 0
        elif padding == "same":
            total = dilation * (K - 1)
            pad_l = total // 2
            pad_r = total - pad_l
        else:
            raise ValueError(padding)
    else:
        pad_l = pad_r = int(padding)

    halo = dilation * (K - 1)
    L_pad = L + pad_l + pad_r
    L_out_full = L_pad - halo                       # stride-1 output length
    L_out = (L_pad - halo - 1) // stride + 1        # PyTorch output length
    assert L_out_full >= 1, "kernel window does not fit the (padded) input"

    # --- tile geometry -------------------------------------------------------
    halo_blk = _round_up(max(halo, 1), 128)         # 128-aligned halo block
    if tile_l is None:
        tile_l = min(512, _round_up(L_out_full, 128))
    tile_l = _round_up(tile_l, halo_blk)            # halo index_map divisibility
    n_tiles = pl.cdiv(L_out_full, tile_l)
    halo_ratio = tile_l // halo_blk
    L_tot = n_tiles * tile_l + halo_blk             # padded input length

    # --- pad input (conv padding + tile alignment in one pad) ---------------
    # TODO(synk): for 'zeros' mode the padding could be masked in-kernel instead
    # of materializing a padded copy of x in HBM.
    mode_map = {"zeros": "constant", "reflect": "reflect",
                "replicate": "edge", "circular": "wrap"}
    if padding_mode == "zeros":
        x_p = jnp.pad(x, ((0, 0), (0, 0), (pad_l, L_tot - L - pad_l)))
    else:
        x_p = jnp.pad(x, ((0, 0), (0, 0), (pad_l, pad_r)),
                      mode=mode_map[padding_mode])
        x_p = jnp.pad(x_p, ((0, 0), (0, 0), (0, L_tot - L_pad)))

    # --- fold K into the contraction: (C_out, K*C_in_g) ---------------------
    w2 = jnp.transpose(weight, (0, 2, 1)).reshape(C_out, K * C_in_g)
    if bias is None:
        bias = jnp.zeros((C_out,), jnp.float32)
    b2 = bias.astype(jnp.float32).reshape(C_out, 1)

    out_full = pl.pallas_call(
        partial(_qconv1d_kernel, K=K, dilation=dilation, halo=halo,
                tile_l=tile_l, compute_dtype=compute_dtype),
        out_shape=jax.ShapeDtypeStruct((B, C_out, n_tiles * tile_l), x.dtype),
        grid=(B, groups, n_tiles),
        in_specs=[
            pl.BlockSpec((1, C_in_g, tile_l), lambda b, g, t: (b, g, t)),
            pl.BlockSpec((1, C_in_g, halo_blk),
                         lambda b, g, t: (b, g, (t + 1) * halo_ratio)),
            pl.BlockSpec((C_out_g, K * C_in_g), lambda b, g, t: (g, 0)),
            pl.BlockSpec((C_out_g, 1), lambda b, g, t: (g, 0)),
        ],
        out_specs=pl.BlockSpec((1, C_out_g, tile_l), lambda b, g, t: (b, g, t)),
        compiler_params=pltpu.CompilerParams(
            dimension_semantics=("parallel", "parallel", "parallel"),
            vmem_limit_bytes=vmem_limit_bytes),
    )(x_p, x_p, w2, b2)

    if stride == 1:
        return out_full[:, :, :L_out]
    # TODO(synk): pre-phase the input for stride>1 instead of computing the
    # stride-1 result and subsampling (costs stride-x extra MXU work).
    return out_full[:, :, :(L_out - 1) * stride + 1:stride]


# ---------------------------------------------------------------------------
# Deterministic parameter init (mimics kaiming_uniform_(a=sqrt(5)))
# ---------------------------------------------------------------------------
def init_qconv1d_params(key, in_channels, out_channels, kernel_size, groups=1,
                        bias=True, dtype=jnp.float32):
    a4, b4 = out_channels // 4, (in_channels // groups) // 4
    shape = (a4, b4, kernel_size)
    fan_in = b4 * kernel_size
    w_bound = 1.0 / math.sqrt(fan_in)
    ks = jax.random.split(key, 5)
    r_w = jax.random.uniform(ks[0], shape, dtype, -w_bound, w_bound)
    i_w = jax.random.uniform(ks[1], shape, dtype, -w_bound, w_bound)
    j_w = jax.random.uniform(ks[2], shape, dtype, -w_bound, w_bound)
    k_w = jax.random.uniform(ks[3], shape, dtype, -w_bound, w_bound)
    b = None
    if bias:
        b = jax.random.uniform(ks[4], (out_channels,), dtype, -w_bound, w_bound)
    return r_w, i_w, j_w, k_w, b


# ---------------------------------------------------------------------------
if __name__ == "__main__":
    key = jax.random.PRNGKey(0)

    def reference(x, r_w, i_w, j_w, k_w, bias, stride, padding, dilation, groups):
        W = construct_quaternion_weight(r_w, i_w, j_w, k_w)
        out = jax.lax.conv_general_dilated(
            x, W, window_strides=(stride,), padding=[(padding, padding)],
            rhs_dilation=(dilation,), dimension_numbers=("NCH", "OIH", "NCH"),
            feature_group_count=groups)
        return out + bias[None, :, None]

    configs = [
        # (B, C_in, C_out, K, L, stride, padding, dilation, groups)
        (2, 8, 8, 3, 16, 1, 1, 1, 1),     # QConv1d(8, 8, 3, padding=1)
        (2, 8, 12, 3, 32, 2, 2, 2, 1),    # strided + dilated
        (2, 16, 16, 5, 24, 1, 2, 1, 2),   # grouped
    ]
    for (B, C_in, C_out, K, L, s, p, d, g) in configs:
        key, k_x, k_p = jax.random.split(key, 3)
        x = jax.random.normal(k_x, (B, C_in, L), jnp.float32)
        r_w, i_w, j_w, k_w, bias = init_qconv1d_params(
            k_p, C_in, C_out, K, groups=g, bias=True)

        out = qconv1d(x, r_w, i_w, j_w, k_w, bias, stride=s, padding=p,
                      dilation=d, groups=g, padding_mode="zeros")
        out = jax.block_until_ready(out)

        ref = reference(x, r_w, i_w, j_w, k_w, bias, s, p, d, g)
        assert out.shape == ref.shape, (out.shape, ref.shape)
        err = float(jnp.max(jnp.abs(out - ref)))
        assert jnp.allclose(out, ref, atol=1e-4, rtol=1e-4), err

    print("KERNEL_OK")
</pallas_src>

<mosaic_0001>
module attributes {stable_mosaic.version = 11 : i64} {
  func.func @_qconv1d_kernel(%arg0: i32, %arg1: i32, %arg2: i32, %arg3: memref<1x8x128xf32, #tpu.memory_space<vmem>>, %arg4: memref<1x8x128xf32, #tpu.memory_space<vmem>>, %arg5: memref<8x24xf32, #tpu.memory_space<vmem>>, %arg6: memref<8x1xf32, #tpu.memory_space<vmem>>, %arg7: memref<1x8x128xf32, #tpu.memory_space<vmem>>) attributes {dimension_semantics = [#tpu.dimension_semantics<parallel>, #tpu.dimension_semantics<parallel>, #tpu.dimension_semantics<parallel>], iteration_bounds = array<i64: 2, 1, 1>, scalar_prefetch = 0 : i64, scratch_operands = 0 : i64, tpu.core_type = #tpu.core_type<tc>, window_params = [{transform_indices = @transform_0, window_bounds = array<i64: 1, 8, 128>}, {transform_indices = @transform_1, window_bounds = array<i64: 1, 8, 128>}, {transform_indices = @transform_2, window_bounds = array<i64: 8, 24>}, {transform_indices = @transform_3, window_bounds = array<i64: 8, 1>}, {transform_indices = @transform_4, window_bounds = array<i64: 1, 8, 128>}]} {
    %c0 = arith.constant 0 : index
    %c0_0 = arith.constant 0 : index
    %c0_1 = arith.constant 0 : index
    %0 = vector.load %arg3[%c0, %c0_0, %c0_1] : memref<1x8x128xf32, #tpu.memory_space<vmem>>, vector<1x8x128xf32>
    %1 = vector.shape_cast %0 : vector<1x8x128xf32> to vector<8x128xf32>
    %c0_2 = arith.constant 0 : index
    %c0_3 = arith.constant 0 : index
    %c0_4 = arith.constant 0 : index
    %2 = vector.load %arg4[%c0_2, %c0_3, %c0_4] : memref<1x8x128xf32, #tpu.memory_space<vmem>>, vector<1x8x128xf32>
    %3 = vector.shape_cast %2 : vector<1x8x128xf32> to vector<8x128xf32>
    %4 = vector.extract_strided_slice %3 {offsets = [0, 0], sizes = [8, 2], strides = [1, 1]} : vector<8x128xf32> to vector<8x2xf32>
    %5 = tpu.concatenate %1, %4 in 1 : vector<8x128xf32>, vector<8x2xf32> -> vector<8x130xf32>
    %c0_5 = arith.constant 0 : index
    %c0_6 = arith.constant 0 : index
    %6 = vector.load %arg5[%c0_5, %c0_6] : memref<8x24xf32, #tpu.memory_space<vmem>>, vector<8x24xf32>
    %7 = vector.extract_strided_slice %5 {offsets = [0, 0], sizes = [8, 128], strides = [1, 1]} : vector<8x130xf32> to vector<8x128xf32>
    %8 = vector.extract_strided_slice %5 {offsets = [0, 1], sizes = [8, 128], strides = [1, 1]} : vector<8x130xf32> to vector<8x128xf32>
    %9 = vector.extract_strided_slice %5 {offsets = [0, 2], sizes = [8, 128], strides = [1, 1]} : vector<8x130xf32> to vector<8x128xf32>
    %10 = tpu.concatenate %7, %8, %9 in 0 : vector<8x128xf32>, vector<8x128xf32>, vector<8x128xf32> -> vector<24x128xf32>
    %cst = arith.constant dense<0.000000e+00> : vector<8x128xf32>
    %11 = tpu.matmul %6, %10, %cst {dimension_numbers = #tpu.dot_dimension_numbers<[1], [0], [0], [1], [0, 0, 1, 1], [], []>} : vector<8x24xf32>, vector<24x128xf32>, vector<8x128xf32> -> vector<8x128xf32>
    %c0_7 = arith.constant 0 : index
    %c0_8 = arith.constant 0 : index
    %12 = vector.load %arg6[%c0_7, %c0_8] : memref<8x1xf32, #tpu.memory_space<vmem>>, vector<8x1xf32>
    %13 = vector.broadcast %12 : vector<8x1xf32> to vector<8x128xf32>
    %14 = arith.addf %11, %13 : vector<8x128xf32>
    %c0_9 = arith.constant 0 : index
    %c0_10 = arith.constant 0 : index
    %c0_11 = arith.constant 0 : index
    %15 = vector.load %arg7[%c0_9, %c0_10, %c0_11] : memref<1x8x128xf32, #tpu.memory_space<vmem>>, vector<1x8x128xf32>
    %16 = vector.shape_cast %15 : vector<1x8x128xf32> to vector<8x128xf32>
    %17 = vector.shape_cast %14 : vector<8x128xf32> to vector<1x8x128xf32>
    tpu.vector_store %arg7[%c0_9, %c0_10, %c0_11], %17 {strides = array<i32>} : memref<1x8x128xf32, #tpu.memory_space<vmem>>, vector<1x8x128xf32>,
    return
  }
  func.func @transform_0(%arg0: i32, %arg1: i32, %arg2: i32) -> (i32, i32, i32) {
    %c0_i32 = arith.constant 0 : i32
    return %arg0, %arg1, %arg2 : i32, i32, i32
  }
  func.func @transform_1(%arg0: i32, %arg1: i32, %arg2: i32) -> (i32, i32, i32) {
    %c1_i32 = arith.constant 1 : i32
    %0 = arith.addi %arg2, %c1_i32 : i32
    %c1_i32_0 = arith.constant 1 : i32
    %1 = arith.muli %0, %c1_i32_0 : i32
    %c0_i32 = arith.constant 0 : i32
    return %arg0, %arg1, %1 : i32, i32, i32
  }
  func.func @transform_2(%arg0: i32, %arg1: i32, %arg2: i32) -> (i32, i32) {
    %c0_i32 = arith.constant 0 : i32
    %c0_i32_0 = arith.constant 0 : i32
    return %arg1, %c0_i32 : i32, i32
  }
  func.func @transform_3(%arg0: i32, %arg1: i32, %arg2: i32) -> (i32, i32) {
    %c0_i32 = arith.constant 0 : i32
    %c0_i32_0 = arith.constant 0 : i32
    return %arg1, %c0_i32 : i32, i32
  }
  func.func @transform_4(%arg0: i32, %arg1: i32, %arg2: i32) -> (i32, i32, i32) {
    %c0_i32 = arith.constant 0 : i32
    return %arg0, %arg1, %arg2 : i32, i32, i32
  }
}

</mosaic_0001>

<llo_original>
// kernel: tpu_custom_call.1
$region0: #{tpu_custom_call.1}
  #allocation0 [shape = 'u32[]', space=smem, size = 0x4, offset = 0x4, fixed_abs, tag = 'smem constant byte address 0x4 - core index']
  #allocation1 [shape = 'u32[72,128]{1,0:T(1,128)}', space=vmem, size = 0x9000, scoped, tag = 'internal scratch']
  %s0 = inlined_call_operand.hbm [shape: f32[2,8,256], index: 0, kind: input, shape index: {}]
  %s1 = inlined_call_operand.hbm [shape: f32[2,8,256], index: 1, kind: input, shape index: {}]
  %s2 = inlined_call_operand.vmem [shape: f32[8,24], index: 2, kind: input, shape index: {}]
  %s3 = inlined_call_operand.vmem [shape: f32[8,1], index: 3, kind: input, shape index: {}]
  %s4 = inlined_call_operand.hbm [shape: f32[2,8,128], index: 4, kind: output, shape index: {}]
  %s5 = sld [smem:[#allocation0]]
  $region57: #{tpu_custom_call.1} parent=0
    _
  %s7 = ssub.s32 1, %s5
  %s8 = scalar_select 0, %s7, %s5
  $region1: #{tpu_custom_call.1} parent=0
    #allocation2 [shape = 'u8[8192]{0}', space=vmem, size = 0x2000, scoped, tag = 'input window, operand 0']
    #allocation3 [shape = 's32[2]{0}', space=sflag, size = 0x8, scoped, tag = 'scoped memory for tpu_custom_call.1']
    #allocation4 [shape = 's32[2]{0}', space=sflag, size = 0x8, scoped, tag = 'scoped memory for tpu_custom_call.1']
    #allocation5 [shape = 'u8[8192]{0}', space=vmem, size = 0x2000, scoped, tag = 'input window, operand 1']
    #allocation6 [shape = 's32[2]{0}', space=sflag, size = 0x8, scoped, tag = 'scoped memory for tpu_custom_call.1']
    #allocation7 [shape = 'u8[8192]{0}', space=vmem, size = 0x2000, scoped, tag = 'output window, operand 0']
    %9 = vsyncpa [#allocation3], 0
    %s10 = scalar_lea.sflag [#allocation3], 1
    %11 = vsyncpa %s10, 0
    %12 = vsyncpa [#allocation6], 0
    %s13 = scalar_lea.sflag [#allocation6], 1
    %14 = vsyncpa %s13, 0
    %15 = vsyncpa [#allocation4], 0
    %s16 = scalar_lea.sflag [#allocation4], 1
    %17 = vsyncpa %s16, 0
    loop: start=0, step=1, limit=4
    $region2: #{tpu_custom_call.1} parent=1 // loop_pre_header
      _
    $region3: #{tpu_custom_call.1} parent=1 // loop_header
      %s19 = sphi 0, %s23
      %p20 = scmp.ge.s32.totalorder %s19, 4
      %s26 = sphi 0, %s45
      %s27 = sphi 0, %s41
      %s28 = sphi 0, %s37
      %s29 = sphi 0, %s26
      %s30 = sphi 0, %s27
      %s31 = sphi 0, %s28
      %s32 = sphi 0, %s29
      %s33 = sphi 0, %s30
      %s34 = sphi 0, %s31
      %s52 = sphi 0, %s54
      %s55 = sphi 0, %s52
      %s56 = sphi 0, %s55
      %s72 = sphi 0, %s56
      %s84 = sphi 0, %s86
      %s87 = sphi 0, %s84
      %s88 = sphi 0, %s87
      %s104 = sphi 0, %s88
      %s110 = sphi 0, %s112
      %s113 = sphi 0, %s110
      %s114 = sphi 0, %s113
      %s130 = sphi 0, %s114
      %s136 = sphi 0, %s138
      %s139 = sphi 0, %s136
      %s140 = sphi 0, %s139
      %s156 = sphi 0, %s140
      %s166 = sphi 0, %s168
      %s169 = sphi 0, %s166
      %s170 = sphi 0, %s169
      %s186 = sphi 0, %s170
    $region4: #{tpu_custom_call.1} parent=1 // loop_header_branch
      %22 = sbr.rel (%p20) target = $region8
    $region5: #{tpu_custom_call.1} parent=1 // loop_body
      %s24 = ssub.s32 %s19, 1
      %s25 = ssub.s32 %s19, 2
      %s35 = sadd.s32 1, %s28
      %p36 = scmp.ge.s32.totalorder %s35, 1
      %s37 = scalar_select %p36, 0, %s35
      %s38 = sadd.s32 1, %s27
      %s39 = scalar_select %p36, %s38, %s27
      %p40 = scmp.ge.s32.totalorder %s39, 1
      %s41 = scalar_select %p40, 0, %s39
      %s42 = sadd.s32 1, %s26
      %s43 = scalar_select %p40, %s42, %s26
      %p44 = scmp.ge.s32.totalorder %s43, 2
      %s45 = scalar_select %p44, 0, %s43
      %s46 = ssub.s32 %s26, %s45
      %s47 = ssub.s32 %s27, %s41
      %s48 = sor.u32 %s46, %s47
      %s49 = ssub.s32 %s28, %s37
      %s50 = sor.u32 %s48, %s49
      %p51 = scmp.eq.s32.totalorder %s50, 0
      %s53 = sadd.s32 %s52, 1
      %s54 = scalar_select %p51, %s52, %s53
      %p57 = pneg %p51
      %p58 = scmp.eq.s32.totalorder %s19, 1
      %p59 = por %p57, %p58
      %p60 = scmp.ne.s32.totalorder %s52, %s55
      %p61 = scmp.eq.s32.totalorder %s19, 0
      %p62 = por %p60, %p61
      %p63 = scmp.ne.s32.totalorder %s52, %s55
      %p64 = scmp.eq.s32.totalorder %s24, 1
      %p65 = por %p63, %p64
      %p66 = scmp.ne.s32.totalorder %s55, %s56
      %p67 = scmp.eq.s32.totalorder %s24, 0
      %p68 = por %p66, %p67
      %p69 = scmp.ne.s32.totalorder %s55, %s56
      %p70 = scmp.eq.s32.totalorder %s25, 1
      %p71 = por %p69, %p70
      %p73 = scmp.ne.s32.totalorder %s56, %s72
      %p74 = scmp.eq.s32.totalorder %s25, 0
      %p75 = por %p73, %p74
      %s76 = sadd.s32 %s28, 1
      %s77 = sadd.s32 %s37, 1
      %s78 = ssub.s32 %s26, %s45
      %s79 = ssub.s32 %s27, %s41
      %s80 = sor.u32 %s78, %s79
      %s81 = ssub.s32 %s76, %s77
      %s82 = sor.u32 %s80, %s81
      %p83 = scmp.eq.s32.totalorder %s82, 0
      %s85 = sadd.s32 %s84, 1
      %s86 = scalar_select %p83, %s84, %s85
      %p89 = pneg %p83
      %p90 = scmp.eq.s32.totalorder %s19, 1
      %p91 = por %p89, %p90
      %p92 = scmp.ne.s32.totalorder %s84, %s87
      %p93 = scmp.eq.s32.totalorder %s19, 0
      %p94 = por %p92, %p93
      %p95 = scmp.ne.s32.totalorder %s84, %s87
      %p96 = scmp.eq.s32.totalorder %s24, 1
      %p97 = por %p95, %p96
      %p98 = scmp.ne.s32.totalorder %s87, %s88
      %p99 = scmp.eq.s32.totalorder %s24, 0
      %p100 = por %p98, %p99
      %p101 = scmp.ne.s32.totalorder %s87, %s88
      %p102 = scmp.eq.s32.totalorder %s25, 1
      %p103 = por %p101, %p102
      %p105 = scmp.ne.s32.totalorder %s88, %s104
      %p106 = scmp.eq.s32.totalorder %s25, 0
      %p107 = por %p105, %p106
      %s108 = ssub.s32 %s27, %s41
      %p109 = scmp.eq.s32.totalorder %s108, 0
      %s111 = sadd.s32 %s110, 1
      %s112 = scalar_select %p109, %s110, %s111
      %p115 = pneg %p109
      %p116 = scmp.eq.s32.totalorder %s19, 1
      %p117 = por %p115, %p116
      %p118 = scmp.ne.s32.totalorder %s110, %s113
      %p119 = scmp.eq.s32.totalorder %s19, 0
      %p120 = por %p118, %p119
      %p121 = scmp.ne.s32.totalorder %s110, %s113
      %p122 = scmp.eq.s32.totalorder %s24, 1
      %p123 = por %p121, %p122
      %p124 = scmp.ne.s32.totalorder %s113, %s114
      %p125 = scmp.eq.s32.totalorder %s24, 0
      %p126 = por %p124, %p125
      %p127 = scmp.ne.s32.totalorder %s113, %s114
      %p128 = scmp.eq.s32.totalorder %s25, 1
      %p129 = por %p127, %p128
      %p131 = scmp.ne.s32.totalorder %s114, %s130
      %p132 = scmp.eq.s32.totalorder %s25, 0
      %p133 = por %p131, %p132
      %s134 = ssub.s32 %s27, %s41
      %p135 = scmp.eq.s32.totalorder %s134, 0
      %s137 = sadd.s32 %s136, 1
      %s138 = scalar_select %p135, %s136, %s137
      %p141 = pneg %p135
      %p142 = scmp.eq.s32.totalorder %s19, 1
      %p143 = por %p141, %p142
      %p144 = scmp.ne.s32.totalorder %s136, %s139
      %p145 = scmp.eq.s32.totalorder %s19, 0
      %p146 = por %p144, %p145
      %p147 = scmp.ne.s32.totalorder %s136, %s139
      %p148 = scmp.eq.s32.totalorder %s24, 1
      %p149 = por %p147, %p148
      %p150 = scmp.ne.s32.totalorder %s139, %s140
      %p151 = scmp.eq.s32.totalorder %s24, 0
      %p152 = por %p150, %p151
      %p153 = scmp.ne.s32.totalorder %s139, %s140
      %p154 = scmp.eq.s32.totalorder %s25, 1
      %p155 = por %p153, %p154
      %p157 = scmp.ne.s32.totalorder %s140, %s156
      %p158 = scmp.eq.s32.totalorder %s25, 0
      %p159 = por %p157, %p158
      %s160 = ssub.s32 %s26, %s45
      %s161 = ssub.s32 %s27, %s41
      %s162 = sor.u32 %s160, %s161
      %s163 = ssub.s32 %s28, %s37
      %s164 = sor.u32 %s162, %s163
      %p165 = scmp.eq.s32.totalorder %s164, 0
      %s167 = sadd.s32 %s166, 1
      %s168 = scalar_select %p165, %s166, %s167
      %p171 = pneg %p165
      %p172 = scmp.eq.s32.totalorder %s19, 1
      %p173 = por %p171, %p172
      %p174 = scmp.ne.s32.totalorder %s166, %s169
      %p175 = scmp.eq.s32.totalorder %s19, 0
      %p176 = por %p174, %p175
      %p177 = scmp.ne.s32.totalorder %s166, %s169
      %p178 = scmp.eq.s32.totalorder %s24, 1
      %p179 = por %p177, %p178
      %p180 = scmp.ne.s32.totalorder %s169, %s170
      %p181 = scmp.eq.s32.totalorder %s24, 0
      %p182 = por %p180, %p181
      %p183 = scmp.ne.s32.totalorder %s169, %s170
      %p184 = scmp.eq.s32.totalorder %s25, 1
      %p185 = por %p183, %p184
      %p187 = scmp.ne.s32.totalorder %s170, %s186
      %p188 = scmp.eq.s32.totalorder %s25, 0
      %p189 = por %p187, %p188
      %p190 = scmp.le.s32.totalorder 1, %s19
      %p191 = scmp.lt.s32.totalorder %s19, 3
      %p192 = pnand %p190, %p191
      %p193 = pneg %p192
      // Predicated region
      $region9: #{tpu_custom_call.1} parent=5 // pred_check
        _
      $region10: #{tpu_custom_call.1} parent=5 // pred_check_branch
        %195 = sbr.rel (%p192) target = $region12
      $region11: #{tpu_custom_call.1} parent=5 // pred_region
        %s196 = ssub.s32 %s19, 1
        // Predicated region
        $region13: #{tpu_custom_call.1} parent=11 // pred_check
          %p197 = pneg %p126
        $region14: #{tpu_custom_call.1} parent=11 // pred_check_branch
          %199 = sbr.rel (%p197) target = $region16
        $region15: #{tpu_custom_call.1} parent=11 // pred_region
          %p200 = scmp.lt.s32.totalorder %s30, 0
          %s201 = scalar_select %p200, %s30, 0
          %s202 = smul.addr %s201, 8
          %s203 = scalar_lea.vmem %s2, %s202
        $region16: #{tpu_custom_call.1} parent=11 // pred_fallthru
          _
        // Predicated region
        $region17: #{tpu_custom_call.1} parent=11 // pred_check
          %p204 = pneg %p152
        $region18: #{tpu_custom_call.1} parent=11 // pred_check_branch
          %206 = sbr.rel (%p204) target = $region20
        $region19: #{tpu_custom_call.1} parent=11 // pred_region
          %p207 = scmp.lt.s32.totalorder %s30, 0
          %s208 = scalar_select %p207, %s30, 0
          %s209 = smul.addr %s208, 8
          %s210 = scalar_lea.vmem %s3, %s209
        $region20: #{tpu_custom_call.1} parent=11 // pred_fallthru
          _
      $region12: #{tpu_custom_call.1} parent=5 // pred_fallthru
        _
      %p211 = scmp.lt.s32.totalorder %s19, 2
      // Predicated region
      $region21: #{tpu_custom_call.1} parent=5 // pred_check
        %p212 = pneg %p211
      $region22: #{tpu_custom_call.1} parent=5 // pred_check_branch
        %214 = sbr.rel (%p212) target = $region24
      $region23: #{tpu_custom_call.1} parent=5 // pred_region
        // Predicated region
        $region25: #{tpu_custom_call.1} parent=23 // pred_check
          %p215 = pneg %p62
        $region26: #{tpu_custom_call.1} parent=23 // pred_check_branch
          %217 = sbr.rel (%p215) target = $region28
        $region27: #{tpu_custom_call.1} parent=23 // pred_region
          %s218 = sand.u32 %s52, 1
          %s219 = scalar_lea.sflag [#allocation3], %s218
          %s220 = sand.u32 %s52, 1
          %s221 = smul.addr %s220, 8
          %s222 = scalar_lea.vmem [#allocation2], %s221
          %224 = vsyncadd %s219, 0
          %s225 = smul.addr %s27, 2
          %s226 = sadd.s32 %s28, %s225
          %s227 = smul.addr %s26, 2
          %s228 = sadd.s32 %s226, %s227
          %s229 = smul.addr %s228, 8
          %s230 = scalar_lea.hbm %s0, %s229
          %s232 = sshll.u32 %s230, 4
          %s233 = int_to_ptr.hbm [resolvable:$true] %s232
          %s234 = sshll.u32 %s222, 4
          %s235 = int_to_ptr.vmem [resolvable:$true] %s234
          %237 = dma.hbm_to_vmem [thread:$0]  %s233, 128, %s235, %s219
        $region28: #{tpu_custom_call.1} parent=23 // pred_fallthru
          _
        // Predicated region
        $region29: #{tpu_custom_call.1} parent=23 // pred_check
          %p238 = pneg %p94
        $region30: #{tpu_custom_call.1} parent=23 // pred_check_branch
          %240 = sbr.rel (%p238) target = $region32
        $region31: #{tpu_custom_call.1} parent=23 // pred_region
          %s241 = sand.u32 %s84, 1
          %s242 = scalar_lea.sflag [#allocation6], %s241
          %s243 = sand.u32 %s84, 1
          %s244 = smul.addr %s243, 8
          %s245 = scalar_lea.vmem [#allocation5], %s244
          %s246 = sadd.s32 %s28, 1
          %248 = vsyncadd %s242, 0
          %s249 = smul.addr %s27, 2
          %s250 = sadd.s32 %s246, %s249
          %s251 = smul.addr %s26, 2
          %s252 = sadd.s32 %s250, %s251
          %s253 = smul.addr %s252, 8
          %s254 = scalar_lea.hbm %s1, %s253
          %s256 = sshll.u32 %s254, 4
          %s257 = int_to_ptr.hbm [resolvable:$true] %s256
          %s258 = sshll.u32 %s245, 4
          %s259 = int_to_ptr.vmem [resolvable:$true] %s258
          %261 = dma.hbm_to_vmem [thread:$0]  %s257, 128, %s259, %s242
        $region32: #{tpu_custom_call.1} parent=23 // pred_fallthru
          _
      $region24: #{tpu_custom_call.1} parent=5 // pred_fallthru
        _
      %p262 = scmp.le.s32.totalorder 1, %s19
      %p263 = scmp.lt.s32.totalorder %s19, 3
      %p264 = pnand %p262, %p263
      %p265 = pneg %p264
      // Predicated region
      $region33: #{tpu_custom_call.1} parent=5 // pred_check
        _
      $region34: #{tpu_custom_call.1} parent=5 // pred_check_branch
        %267 = sbr.rel (%p264) target = $region36
      $region35: #{tpu_custom_call.1} parent=5 // pred_region
        %s268 = ssub.s32 %s19, 1
        %s269 = sand.u32 %s55, 1
        %s270 = scalar_lea.sflag [#allocation3], %s269
        %s271 = sand.u32 %s55, 1
        %s272 = smul.addr %s271, 8
        %s273 = scalar_lea.vmem [#allocation2], %s272
        // Predicated region
        $region37: #{tpu_custom_call.1} parent=35 // pred_check
          %p274 = pneg %p68
        $region38: #{tpu_custom_call.1} parent=35 // pred_check_branch
          %276 = sbr.rel (%p274) target = $region40
        $region39: #{tpu_custom_call.1} parent=35 // pred_region
          %278 = dma.done %s270, 128
        $region40: #{tpu_custom_call.1} parent=35 // pred_fallthru
          _
        %s279 = sand.u32 %s87, 1
        %s280 = scalar_lea.sflag [#allocation6], %s279
        %s281 = sand.u32 %s87, 1
        %s282 = smul.addr %s281, 8
        %s283 = scalar_lea.vmem [#allocation5], %s282
        // Predicated region
        $region41: #{tpu_custom_call.1} parent=35 // pred_check
          %p284 = pneg %p100
        $region42: #{tpu_custom_call.1} parent=35 // pred_check_branch
          %286 = sbr.rel (%p284) target = $region44
        $region43: #{tpu_custom_call.1} parent=35 // pred_region
          %288 = dma.done %s280, 128
        $region44: #{tpu_custom_call.1} parent=35 // pred_fallthru
          _
        %s289 = sand.u32 %s55, 1
        %s290 = scalar_lea.sflag [#allocation3], %s289
        %s291 = sand.u32 %s55, 1
        %s292 = smul.addr %s291, 8
        %s293 = scalar_lea.vmem [#allocation2], %s292
        %p294 = pneg %p68
        %p295 = pneg %p65
        %s296 = sand.u32 %s87, 1
        %s297 = scalar_lea.sflag [#allocation6], %s296
        %s298 = sand.u32 %s87, 1
        %s299 = smul.addr %s298, 8
        %s300 = scalar_lea.vmem [#allocation5], %s299
        %p301 = pneg %p100
        %p302 = pneg %p97
        %p303 = scmp.lt.s32.totalorder %s30, 0
        %s304 = scalar_select %p303, %s30, 0
        %s305 = smul.addr %s304, 8
        %s306 = scalar_lea.vmem %s2, %s305
        %p307 = pneg %p126
        %p308 = pneg %p123
        %p309 = scmp.lt.s32.totalorder %s30, 0
        %s310 = scalar_select %p309, %s30, 0
        %s311 = smul.addr %s310, 8
        %s312 = scalar_lea.vmem %s3, %s311
        %p313 = pneg %p152
        %p314 = pneg %p149
        %p315 = pneg %p182
        %p316 = pneg %p179
        %s317 = sand.u32 %s169, 1
        %s318 = scalar_lea.sflag [#allocation4], %s317
        %s319 = sand.u32 %s169, 1
        %s320 = smul.addr %s319, 8
        %s321 = scalar_lea.vmem [#allocation7], %s320
        %s322 = sadd.s32 %s31, 1
        %p323 = scmp.lt.s32.totalorder %s30, 0
        %s324 = scalar_select %p323, %s30, 0
        %s325 = smul.addr %s324, 8
        %s326 = scalar_lea.vmem %s2, %s325
        %p327 = scmp.lt.s32.totalorder %s30, 0
        %s328 = scalar_select %p327, %s30, 0
        %s329 = smul.addr %s328, 8
        %s330 = scalar_lea.vmem %s3, %s329
        %v331 = vld [vmem:[%s273] sm:$0xff]
        %v332 = vld [vmem:[%s283] sm:$0xff]
        %v333 = vld [vmem:[%s326] sm:$0xff]
        %336 = vrot.lane.b32.xlu0 %v331, 127
        %v337 = vpop.permute.xlu0 %336
        %338 = vrot.lane.b32.xlu0 %v332, 127
        %v339 = vpop.permute.xlu0 %338
        %vm340 = vcmask 1039360
        %v341 = vsel %vm340, %v337, %v339
        %343 = vrot.lane.b32.xlu0 %v331, 126
        %v344 = vpop.permute.xlu0 %343
        %345 = vrot.lane.b32.xlu0 %v332, 126
        %v346 = vpop.permute.xlu0 %345
        %vm347 = vcmask 1031168
        %v348 = vsel %vm347, %v344, %v346
        %v350 = vld [vmem:[%s330] sm:$0xff]
        %352 = vset.pattern.permute.xlu0 0
        %353 = vperm.xlu0 %352, %v350
        %v354 = vpop.permute.xlu0 %353
        %vm356 = vcmask 195584
        %v358 = vsel %vm356, %v333, 0
        %360 = vmatpush.msra.mxu0 0.0
        %361 = vmatpush.msra.mxu0 0.0
        %362 = vmatpush.msra.mxu0 0.0
        %363 = vmatpush.msra.mxu0 0.0
        %364 = vmatpush.msra.mxu0 0.0
        %365 = vmatpush.msra.mxu0 0.0
        %366 = vmatpush.msra.mxu0 0.0
        %367 = vmatpush.msra.mxu0 0.0
        %368 = vmatpush.msra.mxu0 0.0
        %369 = vmatpush.msra.mxu0 0.0
        %370 = vmatpush.msra.mxu0 0.0
        %371 = vmatpush.msra.mxu0 0.0
        %372 = vmatpush.msra.mxu0 0.0
        %373 = vmatpush.msra.mxu0 %v348
        %374 = vmatpush.msra.mxu0 %v341
        %375 = vmatpush.msra.mxu0 %v331
        %376 = vmatmul.f32.gmra.mxu0 %v358
        %v377 = vpop.f32.mrf.mxu0
        %v378 = vadd.f32 %v354, %v377
        %379 = vdwg.mxu0
        %380 = vst [vmem:[%s321] sm:$0xff] %v378
        %s381 = sand.u32 %s169, 1
        %s382 = scalar_lea.sflag [#allocation4], %s381
        %s383 = sand.u32 %s169, 1
        %s384 = smul.addr %s383, 8
        %s385 = scalar_lea.vmem [#allocation7], %s384
        // Predicated region
        $region45: #{tpu_custom_call.1} parent=35 // pred_check
          %p386 = pneg %p179
        $region46: #{tpu_custom_call.1} parent=35 // pred_check_branch
          %388 = sbr.rel (%p386) target = $region48
        $region47: #{tpu_custom_call.1} parent=35 // pred_region
          %390 = vsyncadd %s382, 0
          %s391 = sadd.s32 %s31, %s30
          %s392 = sadd.s32 %s391, %s29
          %s393 = smul.addr %s392, 8
          %s394 = scalar_lea.hbm %s4, %s393
          %s396 = sshll.u32 %s385, 4
          %s397 = int_to_ptr.vmem [resolvable:$true] %s396
          %s398 = sshll.u32 %s394, 4
          %s399 = int_to_ptr.hbm [resolvable:$true] %s398
          %401 = dma.vmem_to_hbm [thread:$0]  %s397, 128, %s399, %s382
        $region48: #{tpu_custom_call.1} parent=35 // pred_fallthru
          _
      $region36: #{tpu_custom_call.1} parent=5 // pred_fallthru
        _
      %p402 = scmp.le.s32.totalorder 2, %s19
      // Predicated region
      $region49: #{tpu_custom_call.1} parent=5 // pred_check
        %p403 = pneg %p402
      $region50: #{tpu_custom_call.1} parent=5 // pred_check_branch
        %405 = sbr.rel (%p403) target = $region52
      $region51: #{tpu_custom_call.1} parent=5 // pred_region
        %s406 = ssub.s32 %s19, 2
        // Predicated region
        $region53: #{tpu_custom_call.1} parent=51 // pred_check
          %p407 = pneg %p185
        $region54: #{tpu_custom_call.1} parent=51 // pred_check_branch
          %409 = sbr.rel (%p407) target = $region56
        $region55: #{tpu_custom_call.1} parent=51 // pred_region
          %s410 = sand.u32 %s170, 1
          %s411 = scalar_lea.sflag [#allocation4], %s410
          %s412 = sand.u32 %s170, 1
          %s413 = smul.addr %s412, 8
          %s414 = scalar_lea.vmem [#allocation7], %s413
          %416 = dma.done %s411, 128
        $region56: #{tpu_custom_call.1} parent=51 // pred_fallthru
          _
      $region52: #{tpu_custom_call.1} parent=5 // pred_fallthru
        _
    $region6: #{tpu_custom_call.1} parent=1 // loop_footer
      %s23 = sadd.s32 1, %s19
    $region7: #{tpu_custom_call.1} parent=1 // loop_footer_branch
      %18 = sbr.rel target = $region3
    $region8: #{tpu_custom_call.1} parent=1 // loop_exit
      _
    %417 = vsyncpa [#allocation3], 1
    %s418 = scalar_lea.sflag [#allocation3], 1
    %419 = vsyncpa %s418, 1
    %420 = vsyncpa [#allocation6], 1
    %s421 = scalar_lea.sflag [#allocation6], 1
    %422 = vsyncpa %s421, 1
    %423 = vsyncpa [#allocation4], 1
    %s424 = scalar_lea.sflag [#allocation4], 1
    %425 = vsyncpa %s424, 1

</llo_original>
